<compile_context>
chip_gen: v7x
topology: tpu7x:2x2x1
jax: 0.10.0
libtpu: 0.0.40
codegen_flags: <defaults>
</compile_context>

<pallas_src>
import functools
import numpy as np
import jax
import jax.numpy as jnp
from jax.experimental import pallas as pl
from jax.experimental.pallas import tpu as pltpu

EPS = 1e-6


def kitnet_kernel(xT_ref, g_ref, wenc_ref, wdec_ref, bh_ref, bv_ref, s_ref,
                  loss_ref):
    """One batch tile; batch sits on the lane axis (last dim, multiple of 128).

    xT_ref   : (n_feat, Bt)  transposed input tile
    g_ref    : (P, n_feat)   0/1 gather matrix (packed slot <- feature)
    wenc_ref : (H, P)        block-diagonal W^T (encoder)
    wdec_ref : (P, H)        block-diagonal W   (decoder)
    bh_ref   : (H, 1)        hidden bias column (broadcast over lanes)
    bv_ref   : (P, 1)        visible bias column
    s_ref    : (A, P)        segment-mean matrix: 1/n_visible[a] on group a's
                             real slots, 0 elsewhere
    loss_ref : (1, Bt)       per-sample summed RMSE (lane-dense store)
    """
    x_t = xT_ref[...]
    # Gather all autoencoder inputs at once: (P, Bt)
    xi = jnp.dot(g_ref[...], x_t, preferred_element_type=jnp.float32)
    # hidden = sigmoid(W^T xi + bh) for the whole ensemble (block-diag matmul)
    hidden = jax.nn.sigmoid(
        jnp.dot(wenc_ref[...], xi, preferred_element_type=jnp.float32)
        + bh_ref[...])
    # reconstruction = sigmoid(W hidden + bv)
    rec = jax.nn.sigmoid(
        jnp.dot(wdec_ref[...], hidden, preferred_element_type=jnp.float32)
        + bv_ref[...])
    d = xi - rec
    # Per-autoencoder masked mean over its real visible slots: (A, Bt)
    mse = jnp.dot(s_ref[...], d * d, preferred_element_type=jnp.float32)
    # loss(b) = sum_a sqrt(mse_a(b) + eps)  -> single lane-dense (1, Bt) store
    loss_ref[...] = jnp.sum(jnp.sqrt(mse + EPS), axis=0, keepdims=True)


@functools.partial(jax.jit, static_argnames=("bt",))
def kitnet_forward(x, G, Wenc, Wdec, bh, bv, S, *, bt=128):
    """x: (B, n_features) -> loss (B,)."""
    B, n = x.shape
    n_tiles = pl.cdiv(B, bt)
    b_pad = n_tiles * bt
    # Batch on lanes: (n, B_pad), zero-padded past B (padded columns produce
    # finite garbage loss that is sliced away below).
    x_t = jnp.zeros((n, b_pad), x.dtype).at[:, :B].set(x.T)

    const = lambda shape: pl.BlockSpec(shape, lambda i: (0, 0))
    out = pl.pallas_call(
        kitnet_kernel,
        out_shape=jax.ShapeDtypeStruct((1, b_pad), jnp.float32),
        grid_spec=pltpu.PrefetchScalarGridSpec(
            num_scalar_prefetch=0,
            grid=(n_tiles,),
            in_specs=[pl.BlockSpec((n, bt), lambda i: (0, i)),
                      const(G.shape), const(Wenc.shape), const(Wdec.shape),
                      const(bh.shape), const(bv.shape), const(S.shape)],
            out_specs=pl.BlockSpec((1, bt), lambda i: (0, i))),
        compiler_params=pltpu.CompilerParams(
            dimension_semantics=("parallel",)),
    )(x_t, G, Wenc, Wdec, bh, bv, S)
    return out[0, :B]


def build_params(key, feature_map, n_features, hidden_ratio=0.75):
    """Build the packed block-diagonal parameters + per-group refs for testing.

    Kitsune init: W ~ U(-1/nv, 1/nv); biases are zero in the original, but we
    use small random biases here so the bias path is actually exercised.
    """
    A = len(feature_map)
    vmax = max(len(v) for v in feature_map)
    hsizes = [int(np.ceil(len(v) * hidden_ratio)) for v in feature_map]
    hmax = max(hsizes)
    P, H = A * vmax, A * hmax

    G = np.zeros((P, n_features), np.float32)
    Wenc = np.zeros((H, P), np.float32)
    Wdec = np.zeros((P, H), np.float32)
    bh = np.zeros((H, 1), np.float32)
    bv = np.zeros((P, 1), np.float32)
    S = np.zeros((A, P), np.float32)
    group_params = []

    keys = jax.random.split(key, A)
    for a, v in enumerate(feature_map):
        nv, nh = len(v), hsizes[a]
        assert nv > 0, "empty feature group would divide by zero"
        kw, kbh, kbv = jax.random.split(keys[a], 3)
        scale = 1.0 / nv
        w = np.asarray(jax.random.uniform(kw, (nv, nh), jnp.float32,
                                          minval=-scale, maxval=scale))
        bha = np.asarray(0.1 * jax.random.normal(kbh, (nh,), jnp.float32))
        bva = np.asarray(0.1 * jax.random.normal(kbv, (nv,), jnp.float32))

        p0, h0 = a * vmax, a * hmax
        for i, f in enumerate(v):
            G[p0 + i, f] = 1.0
        Wdec[p0:p0 + nv, h0:h0 + nh] = w
        Wenc[h0:h0 + nh, p0:p0 + nv] = w.T
        bh[h0:h0 + nh, 0] = bha
        bv[p0:p0 + nv, 0] = bva
        S[a, p0:p0 + nv] = 1.0 / nv
        group_params.append((np.asarray(v), w, bha, bva))

    packed = tuple(jnp.asarray(t) for t in (G, Wenc, Wdec, bh, bv, S))
    return packed, group_params


def kitnet_ref(x, group_params):
    """Pure-JAX reference matching the PyTorch forward exactly."""
    loss = jnp.zeros((x.shape[0],), jnp.float32)
    for v, w, bha, bva in group_params:
        xi = x[:, v]
        h = jax.nn.sigmoid(xi @ w + bha)
        rec = jax.nn.sigmoid(h @ w.T + bva)
        loss = loss + jnp.sqrt(jnp.mean((xi - rec) ** 2, axis=-1) + EPS)
    return loss


if __name__ == "__main__":
    key = jax.random.PRNGKey(0)
    k_x, k_w = jax.random.split(key)

    # KitNET_AD(feat_num=32, max_autoencoder_size=10, hidden_ratio=0.75)
    feat_num = 32
    batch = 200          # not a multiple of 128 -> exercises grid + padding
    # Deterministic non-contiguous feature clustering (as the feature mapper
    # would produce), group sizes capped at max_autoencoder_size=10.
    perm = np.random.RandomState(0).permutation(feat_num)
    feature_map, off = [], 0
    for s in (10, 10, 7, 5):
        feature_map.append(perm[off:off + s].tolist())
        off += s

    (G, Wenc, Wdec, bh, bv, S), group_params = build_params(
        k_w, feature_map, feat_num, hidden_ratio=0.75)

    x = jax.random.uniform(k_x, (batch, feat_num), jnp.float32)

    loss = kitnet_forward(x, G, Wenc, Wdec, bh, bv, S, bt=128)
    loss = jax.block_until_ready(loss)

    loss_ref = kitnet_ref(x, group_params)
    np.testing.assert_allclose(np.asarray(loss), np.asarray(loss_ref),
                               rtol=1e-4, atol=1e-5)

    # TODO(synk): corClust feature-mapper training (train_FM/build_FM) is an
    # offline host-side clustering step, not part of the forward pass.
    print("KERNEL_OK")
</pallas_src>

<mosaic_0001>
module attributes {stable_mosaic.version = 11 : i64} {
  func.func @kitnet_kernel(%arg0: i32, %arg1: memref<32x128xf32, #tpu.memory_space<vmem>>, %arg2: memref<40x32xf32, #tpu.memory_space<vmem>>, %arg3: memref<32x40xf32, #tpu.memory_space<vmem>>, %arg4: memref<40x32xf32, #tpu.memory_space<vmem>>, %arg5: memref<32x1xf32, #tpu.memory_space<vmem>>, %arg6: memref<40x1xf32, #tpu.memory_space<vmem>>, %arg7: memref<4x40xf32, #tpu.memory_space<vmem>>, %arg8: memref<1x128xf32, #tpu.memory_space<vmem>>) attributes {dimension_semantics = [#tpu.dimension_semantics<parallel>], iteration_bounds = array<i64: 2>, scalar_prefetch = 0 : i64, scratch_operands = 0 : i64, tpu.core_type = #tpu.core_type<tc>, window_params = [{transform_indices = @transform_0, window_bounds = array<i64: 32, 128>}, {pipeline_mode = #tpu.pipeline_mode<synchronous>, transform_indices = @transform_1, window_bounds = array<i64: 40, 32>}, {pipeline_mode = #tpu.pipeline_mode<synchronous>, transform_indices = @transform_2, window_bounds = array<i64: 32, 40>}, {pipeline_mode = #tpu.pipeline_mode<synchronous>, transform_indices = @transform_3, window_bounds = array<i64: 40, 32>}, {pipeline_mode = #tpu.pipeline_mode<synchronous>, transform_indices = @transform_4, window_bounds = array<i64: 32, 1>}, {pipeline_mode = #tpu.pipeline_mode<synchronous>, transform_indices = @transform_5, window_bounds = array<i64: 40, 1>}, {pipeline_mode = #tpu.pipeline_mode<synchronous>, transform_indices = @transform_6, window_bounds = array<i64: 4, 40>}, {transform_indices = @transform_7, window_bounds = array<i64: 1, 128>}]} {
    %c0 = arith.constant 0 : index
    %c0_0 = arith.constant 0 : index
    %0 = vector.load %arg1[%c0, %c0_0] : memref<32x128xf32, #tpu.memory_space<vmem>>, vector<32x128xf32>
    %c0_1 = arith.constant 0 : index
    %c0_2 = arith.constant 0 : index
    %1 = vector.load %arg2[%c0_1, %c0_2] : memref<40x32xf32, #tpu.memory_space<vmem>>, vector<40x32xf32>
    %cst = arith.constant dense<0.000000e+00> : vector<40x128xf32>
    %2 = tpu.matmul %1, %0, %cst {dimension_numbers = #tpu.dot_dimension_numbers<[1], [0], [0], [1], [0, 0, 1, 1], [], []>} : vector<40x32xf32>, vector<32x128xf32>, vector<40x128xf32> -> vector<40x128xf32>
    %c0_3 = arith.constant 0 : index
    %c0_4 = arith.constant 0 : index
    %3 = vector.load %arg3[%c0_3, %c0_4] : memref<32x40xf32, #tpu.memory_space<vmem>>, vector<32x40xf32>
    %cst_5 = arith.constant dense<0.000000e+00> : vector<32x128xf32>
    %4 = tpu.matmul %3, %2, %cst_5 {dimension_numbers = #tpu.dot_dimension_numbers<[1], [0], [0], [1], [0, 0, 1, 1], [], []>} : vector<32x40xf32>, vector<40x128xf32>, vector<32x128xf32> -> vector<32x128xf32>
    %c0_6 = arith.constant 0 : index
    %c0_7 = arith.constant 0 : index
    %5 = vector.load %arg5[%c0_6, %c0_7] : memref<32x1xf32, #tpu.memory_space<vmem>>, vector<32x1xf32>
    %6 = vector.broadcast %5 : vector<32x1xf32> to vector<32x128xf32>
    %7 = arith.addf %4, %6 : vector<32x128xf32>
    %8 = arith.negf %7 : vector<32x128xf32>
    %9 = math.exp %8 : vector<32x128xf32>
    %cst_8 = arith.constant 1.000000e+00 : f32
    %10 = vector.broadcast %cst_8 : f32 to vector<32x128xf32>
    %11 = arith.addf %10, %9 : vector<32x128xf32>
    %12 = arith.divf %10, %11 : vector<32x128xf32>
    %c0_9 = arith.constant 0 : index
    %c0_10 = arith.constant 0 : index
    %13 = vector.load %arg4[%c0_9, %c0_10] : memref<40x32xf32, #tpu.memory_space<vmem>>, vector<40x32xf32>
    %cst_11 = arith.constant dense<0.000000e+00> : vector<40x128xf32>
    %14 = tpu.matmul %13, %12, %cst_11 {dimension_numbers = #tpu.dot_dimension_numbers<[1], [0], [0], [1], [0, 0, 1, 1], [], []>} : vector<40x32xf32>, vector<32x128xf32>, vector<40x128xf32> -> vector<40x128xf32>
    %c0_12 = arith.constant 0 : index
    %c0_13 = arith.constant 0 : index
    %15 = vector.load %arg6[%c0_12, %c0_13] : memref<40x1xf32, #tpu.memory_space<vmem>>, vector<40x1xf32>
    %16 = vector.broadcast %15 : vector<40x1xf32> to vector<40x128xf32>
    %17 = arith.addf %14, %16 : vector<40x128xf32>
    %18 = arith.negf %17 : vector<40x128xf32>
    %19 = math.exp %18 : vector<40x128xf32>
    %cst_14 = arith.constant 1.000000e+00 : f32
    %20 = vector.broadcast %cst_14 : f32 to vector<40x128xf32>
    %21 = arith.addf %20, %19 : vector<40x128xf32>
    %22 = arith.divf %20, %21 : vector<40x128xf32>
    %23 = arith.subf %2, %22 : vector<40x128xf32>
    %c0_15 = arith.constant 0 : index
    %c0_16 = arith.constant 0 : index
    %24 = vector.load %arg7[%c0_15, %c0_16] : memref<4x40xf32, #tpu.memory_space<vmem>>, vector<4x40xf32>
    %25 = arith.mulf %23, %23 : vector<40x128xf32>
    %cst_17 = arith.constant dense<0.000000e+00> : vector<4x128xf32>
    %26 = tpu.matmul %24, %25, %cst_17 {dimension_numbers = #tpu.dot_dimension_numbers<[1], [0], [0], [1], [0, 0, 1, 1], [], []>} : vector<4x40xf32>, vector<40x128xf32>, vector<4x128xf32> -> vector<4x128xf32>
    %cst_18 = arith.constant 9.99999997E-7 : f32
    %27 = vector.broadcast %cst_18 : f32 to vector<4x128xf32>
    %28 = arith.addf %26, %27 : vector<4x128xf32>
    %29 = math.sqrt %28 : vector<4x128xf32>
    %cst_19 = arith.constant dense<0.000000e+00> : vector<128xf32>
    %30 = vector.multi_reduction <add>, %29, %cst_19 [0] : vector<4x128xf32> to vector<128xf32>
    %31 = vector.shape_cast %30 : vector<128xf32> to vector<1x128xf32>
    %c0_20 = arith.constant 0 : index
    %c0_21 = arith.constant 0 : index
    %32 = vector.load %arg8[%c0_20, %c0_21] : memref<1x128xf32, #tpu.memory_space<vmem>>, vector<1x128xf32>
    tpu.vector_store %arg8[%c0_20, %c0_21], %31 {strides = array<i32>} : memref<1x128xf32, #tpu.memory_space<vmem>>, vector<1x128xf32>,
    return
  }
  func.func @transform_0(%arg0: i32) -> (i32, i32) {
    %c0_i32 = arith.constant 0 : i32
    %c0_i32_0 = arith.constant 0 : i32
    return %c0_i32, %arg0 : i32, i32
  }
  func.func @transform_1(%arg0: i32) -> (i32, i32) {
    %c0_i32 = arith.constant 0 : i32
    %c0_i32_0 = arith.constant 0 : i32
    %c0_i32_1 = arith.constant 0 : i32
    return %c0_i32, %c0_i32_0 : i32, i32
  }
  func.func @transform_2(%arg0: i32) -> (i32, i32) {
    %c0_i32 = arith.constant 0 : i32
    %c0_i32_0 = arith.constant 0 : i32
    %c0_i32_1 = arith.constant 0 : i32
    return %c0_i32, %c0_i32_0 : i32, i32
  }
  func.func @transform_3(%arg0: i32) -> (i32, i32) {
    %c0_i32 = arith.constant 0 : i32
    %c0_i32_0 = arith.constant 0 : i32
    %c0_i32_1 = arith.constant 0 : i32
    return %c0_i32, %c0_i32_0 : i32, i32
  }
  func.func @transform_4(%arg0: i32) -> (i32, i32) {
    %c0_i32 = arith.constant 0 : i32
    %c0_i32_0 = arith.constant 0 : i32
    %c0_i32_1 = arith.constant 0 : i32
    return %c0_i32, %c0_i32_0 : i32, i32
  }
  func.func @transform_5(%arg0: i32) -> (i32, i32) {
    %c0_i32 = arith.constant 0 : i32
    %c0_i32_0 = arith.constant 0 : i32
    %c0_i32_1 = arith.constant 0 : i32
    return %c0_i32, %c0_i32_0 : i32, i32
  }
  func.func @transform_6(%arg0: i32) -> (i32, i32) {
    %c0_i32 = arith.constant 0 : i32
    %c0_i32_0 = arith.constant 0 : i32
    %c0_i32_1 = arith.constant 0 : i32
    return %c0_i32, %c0_i32_0 : i32, i32
  }
  func.func @transform_7(%arg0: i32) -> (i32, i32) {
    %c0_i32 = arith.constant 0 : i32
    %c0_i32_0 = arith.constant 0 : i32
    return %c0_i32, %arg0 : i32, i32
  }
}

</mosaic_0001>

<llo_original>
// kernel: kitnet_forward.1
$region0: #{kitnet_forward.1}
  #allocation0 [shape = 'u32[]', space=smem, size = 0x4, offset = 0x4, fixed_abs, tag = 'smem constant byte address 0x4 - core index']
  #allocation1 [shape = 'u32[144,128]{1,0:T(1,128)}', space=vmem, size = 0x12000, scoped, tag = 'internal scratch']
  %s0 = inlined_call_operand.vmem [shape: f32[32,256], index: 0, kind: input, shape index: {}]
  %s1 = inlined_call_operand.vmem [shape: f32[40,32], index: 1, kind: input, shape index: {}]
  %s2 = inlined_call_operand.vmem [shape: f32[32,40], index: 2, kind: input, shape index: {}]
  %s3 = inlined_call_operand.vmem [shape: f32[40,32], index: 3, kind: input, shape index: {}]
  %s4 = inlined_call_operand.vmem [shape: f32[32,1], index: 4, kind: input, shape index: {}]
  %s5 = inlined_call_operand.vmem [shape: f32[40,1], index: 5, kind: input, shape index: {}]
  %s6 = inlined_call_operand.vmem [shape: f32[4,40], index: 6, kind: input, shape index: {}]
  %s7 = inlined_call_operand.hbm [shape: f32[1,256], index: 7, kind: output, shape index: {}]
  %s8 = sld [smem:[#allocation0]]
  $region99: #{kitnet_forward.1} parent=0
    _
  %s10 = ssub.s32 1, %s8
  %s11 = scalar_select 0, %s10, %s8
  $region1: #{kitnet_forward.1} parent=0
    #allocation2 [shape = 'u8[32768]{0}', space=vmem, size = 0x8000, scoped, tag = 'input window, operand 0']
    #allocation3 [shape = 'u8[1024]{0}', space=vmem, size = 0x400, scoped, tag = 'output window, operand 0']
    #allocation4 [shape = 's32[2]{0}', space=sflag, size = 0x8, scoped, tag = 'scoped memory for kitnet_forward.1']
    %12 = vsyncpa [#allocation4], 0
    %s13 = scalar_lea.sflag [#allocation4], 1
    %14 = vsyncpa %s13, 0
    loop: start=0, step=1, limit=4
    $region2: #{kitnet_forward.1} parent=1 // loop_pre_header
      _
    $region3: #{kitnet_forward.1} parent=1 // loop_header
      %s16 = sphi 0, %s20
      %p17 = scmp.ge.s32.totalorder %s16, 4
      %s26 = sphi 0, %s28
      %s29 = sphi 0, %s26
      %s30 = sphi 0, %s29
      %s46 = sphi 0, %s30
      %s50 = sphi 0, %s50
      %s52 = sphi 0, %s50
      %s53 = sphi 0, %s52
      %s67 = sphi 0, %s53
      %s71 = sphi 0, %s71
      %s73 = sphi 0, %s71
      %s74 = sphi 0, %s73
      %s88 = sphi 0, %s74
      %s92 = sphi 0, %s92
      %s94 = sphi 0, %s92
      %s95 = sphi 0, %s94
      %s109 = sphi 0, %s95
      %s113 = sphi 0, %s113
      %s115 = sphi 0, %s113
      %s116 = sphi 0, %s115
      %s130 = sphi 0, %s116
      %s134 = sphi 0, %s134
      %s136 = sphi 0, %s134
      %s137 = sphi 0, %s136
      %s151 = sphi 0, %s137
      %s155 = sphi 0, %s155
      %s157 = sphi 0, %s155
      %s158 = sphi 0, %s157
      %s172 = sphi 0, %s158
      %s178 = sphi 0, %s180
      %s181 = sphi 0, %s178
      %s182 = sphi 0, %s181
      %s198 = sphi 0, %s182
    $region4: #{kitnet_forward.1} parent=1 // loop_header_branch
      %19 = sbr.rel (%p17) target = $region8
    $region5: #{kitnet_forward.1} parent=1 // loop_body
      %s21 = ssub.s32 %s16, 1
      %s22 = ssub.s32 %s16, 2
      %s23 = sadd.s32 %s16, 1
      %s24 = ssub.s32 %s16, %s23
      %p25 = scmp.eq.s32.totalorder %s24, 0
      %s27 = sadd.s32 %s26, 1
      %s28 = scalar_select %p25, %s26, %s27
      %p31 = pneg %p25
      %p32 = scmp.eq.s32.totalorder %s16, 1
      %p33 = por %p31, %p32
      %p34 = scmp.ne.s32.totalorder %s26, %s29
      %p35 = scmp.eq.s32.totalorder %s16, 0
      %p36 = por %p34, %p35
      %p37 = scmp.ne.s32.totalorder %s26, %s29
      %p38 = scmp.eq.s32.totalorder %s21, 1
      %p39 = por %p37, %p38
      %p40 = scmp.ne.s32.totalorder %s29, %s30
      %p41 = scmp.eq.s32.totalorder %s21, 0
      %p42 = por %p40, %p41
      %p43 = scmp.ne.s32.totalorder %s29, %s30
      %p44 = scmp.eq.s32.totalorder %s22, 1
      %p45 = por %p43, %p44
      %p47 = scmp.ne.s32.totalorder %s30, %s46
      %p48 = scmp.eq.s32.totalorder %s22, 0
      %p49 = por %p47, %p48
      %s51 = sadd.s32 %s50, 1
      %p54 = scmp.eq.s32.totalorder %s16, 1
      %p55 = scmp.ne.s32.totalorder %s50, %s52
      %p56 = scmp.eq.s32.totalorder %s16, 0
      %p57 = por %p55, %p56
      %p58 = scmp.ne.s32.totalorder %s50, %s52
      %p59 = scmp.eq.s32.totalorder %s21, 1
      %p60 = por %p58, %p59
      %p61 = scmp.ne.s32.totalorder %s52, %s53
      %p62 = scmp.eq.s32.totalorder %s21, 0
      %p63 = por %p61, %p62
      %p64 = scmp.ne.s32.totalorder %s52, %s53
      %p65 = scmp.eq.s32.totalorder %s22, 1
      %p66 = por %p64, %p65
      %p68 = scmp.ne.s32.totalorder %s53, %s67
      %p69 = scmp.eq.s32.totalorder %s22, 0
      %p70 = por %p68, %p69
      %s72 = sadd.s32 %s71, 1
      %p75 = scmp.eq.s32.totalorder %s16, 1
      %p76 = scmp.ne.s32.totalorder %s71, %s73
      %p77 = scmp.eq.s32.totalorder %s16, 0
      %p78 = por %p76, %p77
      %p79 = scmp.ne.s32.totalorder %s71, %s73
      %p80 = scmp.eq.s32.totalorder %s21, 1
      %p81 = por %p79, %p80
      %p82 = scmp.ne.s32.totalorder %s73, %s74
      %p83 = scmp.eq.s32.totalorder %s21, 0
      %p84 = por %p82, %p83
      %p85 = scmp.ne.s32.totalorder %s73, %s74
      %p86 = scmp.eq.s32.totalorder %s22, 1
      %p87 = por %p85, %p86
      %p89 = scmp.ne.s32.totalorder %s74, %s88
      %p90 = scmp.eq.s32.totalorder %s22, 0
      %p91 = por %p89, %p90
      %s93 = sadd.s32 %s92, 1
      %p96 = scmp.eq.s32.totalorder %s16, 1
      %p97 = scmp.ne.s32.totalorder %s92, %s94
      %p98 = scmp.eq.s32.totalorder %s16, 0
      %p99 = por %p97, %p98
      %p100 = scmp.ne.s32.totalorder %s92, %s94
      %p101 = scmp.eq.s32.totalorder %s21, 1
      %p102 = por %p100, %p101
      %p103 = scmp.ne.s32.totalorder %s94, %s95
      %p104 = scmp.eq.s32.totalorder %s21, 0
      %p105 = por %p103, %p104
      %p106 = scmp.ne.s32.totalorder %s94, %s95
      %p107 = scmp.eq.s32.totalorder %s22, 1
      %p108 = por %p106, %p107
      %p110 = scmp.ne.s32.totalorder %s95, %s109
      %p111 = scmp.eq.s32.totalorder %s22, 0
      %p112 = por %p110, %p111
      %s114 = sadd.s32 %s113, 1
      %p117 = scmp.eq.s32.totalorder %s16, 1
      %p118 = scmp.ne.s32.totalorder %s113, %s115
      %p119 = scmp.eq.s32.totalorder %s16, 0
      %p120 = por %p118, %p119
      %p121 = scmp.ne.s32.totalorder %s113, %s115
      %p122 = scmp.eq.s32.totalorder %s21, 1
      %p123 = por %p121, %p122
      %p124 = scmp.ne.s32.totalorder %s115, %s116
      %p125 = scmp.eq.s32.totalorder %s21, 0
      %p126 = por %p124, %p125
      %p127 = scmp.ne.s32.totalorder %s115, %s116
      %p128 = scmp.eq.s32.totalorder %s22, 1
      %p129 = por %p127, %p128
      %p131 = scmp.ne.s32.totalorder %s116, %s130
      %p132 = scmp.eq.s32.totalorder %s22, 0
      %p133 = por %p131, %p132
      %s135 = sadd.s32 %s134, 1
      %p138 = scmp.eq.s32.totalorder %s16, 1
      %p139 = scmp.ne.s32.totalorder %s134, %s136
      %p140 = scmp.eq.s32.totalorder %s16, 0
      %p141 = por %p139, %p140
      %p142 = scmp.ne.s32.totalorder %s134, %s136
      %p143 = scmp.eq.s32.totalorder %s21, 1
      %p144 = por %p142, %p143
      %p145 = scmp.ne.s32.totalorder %s136, %s137
      %p146 = scmp.eq.s32.totalorder %s21, 0
      %p147 = por %p145, %p146
      %p148 = scmp.ne.s32.totalorder %s136, %s137
      %p149 = scmp.eq.s32.totalorder %s22, 1
      %p150 = por %p148, %p149
      %p152 = scmp.ne.s32.totalorder %s137, %s151
      %p153 = scmp.eq.s32.totalorder %s22, 0
      %p154 = por %p152, %p153
      %s156 = sadd.s32 %s155, 1
      %p159 = scmp.eq.s32.totalorder %s16, 1
      %p160 = scmp.ne.s32.totalorder %s155, %s157
      %p161 = scmp.eq.s32.totalorder %s16, 0
      %p162 = por %p160, %p161
      %p163 = scmp.ne.s32.totalorder %s155, %s157
      %p164 = scmp.eq.s32.totalorder %s21, 1
      %p165 = por %p163, %p164
      %p166 = scmp.ne.s32.totalorder %s157, %s158
      %p167 = scmp.eq.s32.totalorder %s21, 0
      %p168 = por %p166, %p167
      %p169 = scmp.ne.s32.totalorder %s157, %s158
      %p170 = scmp.eq.s32.totalorder %s22, 1
      %p171 = por %p169, %p170
      %p173 = scmp.ne.s32.totalorder %s158, %s172
      %p174 = scmp.eq.s32.totalorder %s22, 0
      %p175 = por %p173, %p174
      %s176 = ssub.s32 %s16, %s23
      %p177 = scmp.eq.s32.totalorder %s176, 0
      %s179 = sadd.s32 %s178, 1
      %s180 = scalar_select %p177, %s178, %s179
      %p183 = pneg %p177
      %p184 = scmp.eq.s32.totalorder %s16, 1
      %p185 = por %p183, %p184
      %p186 = scmp.ne.s32.totalorder %s178, %s181
      %p187 = scmp.eq.s32.totalorder %s16, 0
      %p188 = por %p186, %p187
      %p189 = scmp.ne.s32.totalorder %s178, %s181
      %p190 = scmp.eq.s32.totalorder %s21, 1
      %p191 = por %p189, %p190
      %p192 = scmp.ne.s32.totalorder %s181, %s182
      %p193 = scmp.eq.s32.totalorder %s21, 0
      %p194 = por %p192, %p193
      %p195 = scmp.ne.s32.totalorder %s181, %s182
      %p196 = scmp.eq.s32.totalorder %s22, 1
      %p197 = por %p195, %p196
      %p199 = scmp.ne.s32.totalorder %s182, %s198
      %p200 = scmp.eq.s32.totalorder %s22, 0
      %p201 = por %p199, %p200
      %p202 = scmp.le.s32.totalorder 1, %s16
      %p203 = scmp.lt.s32.totalorder %s16, 3
      %p204 = pnand %p202, %p203
      %p205 = pneg %p204
      // Predicated region
      $region9: #{kitnet_forward.1} parent=5 // pred_check
        _
      $region10: #{kitnet_forward.1} parent=5 // pred_check_branch
        %207 = sbr.rel (%p204) target = $region12
      $region11: #{kitnet_forward.1} parent=5 // pred_region
        %s208 = ssub.s32 %s16, 1
        // Predicated region
        $region13: #{kitnet_forward.1} parent=11 // pred_check
          %p209 = pneg %p63
        $region14: #{kitnet_forward.1} parent=11 // pred_check_branch
          %211 = sbr.rel (%p209) target = $region16
        $region15: #{kitnet_forward.1} parent=11 // pred_region
          _
        $region16: #{kitnet_forward.1} parent=11 // pred_fallthru
          _
        // Predicated region
        $region17: #{kitnet_forward.1} parent=11 // pred_check
          %p212 = pneg %p84
        $region18: #{kitnet_forward.1} parent=11 // pred_check_branch
          %214 = sbr.rel (%p212) target = $region20
        $region19: #{kitnet_forward.1} parent=11 // pred_region
          _
        $region20: #{kitnet_forward.1} parent=11 // pred_fallthru
          _
        // Predicated region
        $region21: #{kitnet_forward.1} parent=11 // pred_check
          %p215 = pneg %p105
        $region22: #{kitnet_forward.1} parent=11 // pred_check_branch
          %217 = sbr.rel (%p215) target = $region24
        $region23: #{kitnet_forward.1} parent=11 // pred_region
          _
        $region24: #{kitnet_forward.1} parent=11 // pred_fallthru
          _
        // Predicated region
        $region25: #{kitnet_forward.1} parent=11 // pred_check
          %p218 = pneg %p126
        $region26: #{kitnet_forward.1} parent=11 // pred_check_branch
          %220 = sbr.rel (%p218) target = $region28
        $region27: #{kitnet_forward.1} parent=11 // pred_region
          _
        $region28: #{kitnet_forward.1} parent=11 // pred_fallthru
          _
        // Predicated region
        $region29: #{kitnet_forward.1} parent=11 // pred_check
          %p221 = pneg %p147
        $region30: #{kitnet_forward.1} parent=11 // pred_check_branch
          %223 = sbr.rel (%p221) target = $region32
        $region31: #{kitnet_forward.1} parent=11 // pred_region
          _
        $region32: #{kitnet_forward.1} parent=11 // pred_fallthru
          _
        // Predicated region
        $region33: #{kitnet_forward.1} parent=11 // pred_check
          %p224 = pneg %p168
        $region34: #{kitnet_forward.1} parent=11 // pred_check_branch
          %226 = sbr.rel (%p224) target = $region36
        $region35: #{kitnet_forward.1} parent=11 // pred_region
          _
        $region36: #{kitnet_forward.1} parent=11 // pred_fallthru
          _
      $region12: #{kitnet_forward.1} parent=5 // pred_fallthru
        _
      %p227 = scmp.lt.s32.totalorder %s16, 2
      // Predicated region
      $region37: #{kitnet_forward.1} parent=5 // pred_check
        %p228 = pneg %p227
      $region38: #{kitnet_forward.1} parent=5 // pred_check_branch
        %230 = sbr.rel (%p228) target = $region40
      $region39: #{kitnet_forward.1} parent=5 // pred_region
        // Predicated region
        $region41: #{kitnet_forward.1} parent=39 // pred_check
          %p231 = pneg %p36
        $region42: #{kitnet_forward.1} parent=39 // pred_check_branch
          %233 = sbr.rel (%p231) target = $region44
        $region43: #{kitnet_forward.1} parent=39 // pred_region
          %s234 = sand.u32 %s26, 1
          %s235 = sand.u32 %s26, 1
          %s236 = smul.addr %s235, 32
          %s237 = scalar_lea.vmem [#allocation2], %s236
          %s238 = smul.addr %s16, 8
          %s239 = scalar_lea.vmem %s0, %s238
          // Predicated region
          $region45: #{kitnet_forward.1} parent=43 // pred_check
            _
          $region46: #{kitnet_forward.1} parent=43 // pred_check_branch
            %241 = sbr.rel (0) target = $region48
          $region47: #{kitnet_forward.1} parent=43 // pred_region
            // Predicated region
            $region49: #{kitnet_forward.1} parent=47 // pred_check
              _
            $region50: #{kitnet_forward.1} parent=47 // pred_check_branch
              %243 = sbr.rel (0) target = $region52
            $region51: #{kitnet_forward.1} parent=47 // pred_region
              // Predicated region
              $region64: #{kitnet_forward.1} parent=51 // pred_check
                _
              $region65: #{kitnet_forward.1} parent=51 // pred_check_branch
                %264 = sbr.rel (0) target = $region67
              $region66: #{kitnet_forward.1} parent=51 // pred_region
                loop: start=0, step=1, limit=1
                $region68: #{kitnet_forward.1} parent=66 // loop_pre_header
                  _
                $region69: #{kitnet_forward.1} parent=66 // loop_header
                  %s266 = sphi 0, %s270
                  %p267 = scmp.ge.s32.totalorder %s266, 1
                  %s271 = sphi %s239, %s239
                  %s272 = sphi %s237, %s237
                $region70: #{kitnet_forward.1} parent=66 // loop_header_branch
                  %269 = sbr.rel (%p267) target = $region74
                $region71: #{kitnet_forward.1} parent=66 // loop_body
                  %v273 = vld [vmem:[%s271] sm:$0xff]
                  %274 = vst [vmem:[%s272] sm:$0xff] %v273
                  %v275 = vld [vmem:[%s271 + $0x10] sm:$0xff]
                  %276 = vst [vmem:[%s272 + $0x8] sm:$0xff] %v275
                  %v277 = vld [vmem:[%s271 + $0x20] sm:$0xff]
                  %278 = vst [vmem:[%s272 + $0x10] sm:$0xff] %v277
                  %v279 = vld [vmem:[%s271 + $0x30] sm:$0xff]
                  %280 = vst [vmem:[%s272 + $0x18] sm:$0xff] %v279
                $region72: #{kitnet_forward.1} parent=66 // loop_footer
                  %s270 = sadd.s32 1, %s266
                $region73: #{kitnet_forward.1} parent=66 // loop_footer_branch
                  %265 = sbr.rel target = $region69
                $region74: #{kitnet_forward.1} parent=66 // loop_exit
                  _
              $region67: #{kitnet_forward.1} parent=51 // pred_fallthru
                _
              // Predicated region
              $region75: #{kitnet_forward.1} parent=51 // pred_check
                _
              $region76: #{kitnet_forward.1} parent=51 // pred_check_branch
                %282 = sbr.rel target = $region78
              $region77: #{kitnet_forward.1} parent=51 // pred_region
                _
              $region78: #{kitnet_forward.1} parent=51 // pred_fallthru
                _
            $region52: #{kitnet_forward.1} parent=47 // pred_fallthru
              _
            // Predicated region
            $region53: #{kitnet_forward.1} parent=47 // pred_check
              _
            $region54: #{kitnet_forward.1} parent=47 // pred_check_branch
              %245 = sbr.rel target = $region56
            $region55: #{kitnet_forward.1} parent=47 // pred_region
              loop: start=0, step=1, limit=1
              $region57: #{kitnet_forward.1} parent=55 // loop_pre_header
                _
              $region58: #{kitnet_forward.1} parent=55 // loop_header
                %s248 = sphi 0, %s252
                %p249 = scmp.ge.s32.totalorder %s248, 1
                %s253 = sphi %s239, %s239
                %s254 = sphi %s237, %s237
              $region59: #{kitnet_forward.1} parent=55 // loop_header_branch
                %251 = sbr.rel (%p249) target = $region63
              $region60: #{kitnet_forward.1} parent=55 // loop_body
                %v255 = vld [vmem:[%s253] sm:$0xff]
                %256 = vst [vmem:[%s254] sm:$0xff] %v255
                %v257 = vld [vmem:[%s253 + $0x10] sm:$0xff]
                %258 = vst [vmem:[%s254 + $0x8] sm:$0xff] %v257
                %v259 = vld [vmem:[%s253 + $0x20] sm:$0xff]
                %260 = vst [vmem:[%s254 + $0x10] sm:$0xff] %v259
                %v261 = vld [vmem:[%s253 + $0x30] sm:$0xff]
                %262 = vst [vmem:[%s254 + $0x18] sm:$0xff] %v261
              $region61: #{kitnet_forward.1} parent=55 // loop_footer
                %s252 = sadd.s32 1, %s248
              $region62: #{kitnet_forward.1} parent=55 // loop_footer_branch
                %247 = sbr.rel target = $region58
              $region63: #{kitnet_forward.1} parent=55 // loop_exit
                _
            $region56: #{kitnet_forward.1} parent=47 // pred_fallthru
              _
          $region48: #{kitnet_forward.1} parent=43 // pred_fallthru
            _
          %283 = vnop
        $region44: #{kitnet_forward.1} parent=39 // pred_fallthru
          _
      $region40: #{kitnet_forward.1} parent=5 // pred_fallthru
        _
      %p284 = scmp.le.s32.totalorder 1, %s16
      %p285 = scmp.lt.s32.totalorder %s16, 3
      %p286 = pnand %p284, %p285
      %p287 = pneg %p286
      // Predicated region
      $region79: #{kitnet_forward.1} parent=5 // pred_check
        _
      $region80: #{kitnet_forward.1} parent=5 // pred_check_branch
        %289 = sbr.rel (%p286) target = $region82
      $region81: #{kitnet_forward.1} parent=5 // pred_region
        %s290 = ssub.s32 %s16, 1
        %s291 = sand.u32 %s29, 1
        %s292 = sand.u32 %s29, 1
        %s293 = smul.addr %s292, 32
        %s294 = scalar_lea.vmem [#allocation2], %s293
        // Predicated region
        $region83: #{kitnet_forward.1} parent=81 // pred_check
          %p295 = pneg %p42
        $region84: #{kitnet_forward.1} parent=81 // pred_check_branch
          %297 = sbr.rel (%p295) target = $region86
        $region85: #{kitnet_forward.1} parent=81 // pred_region
          _
        $region86: #{kitnet_forward.1} parent=81 // pred_fallthru
          _
        %s298 = sand.u32 %s29, 1
        %s299 = sand.u32 %s29, 1
        %s300 = smul.addr %s299, 32
        %s301 = scalar_lea.vmem [#allocation2], %s300
        %p302 = pneg %p42
        %p303 = pneg %p39
        %p304 = pneg %p63
        %p305 = pneg %p60
        %p306 = pneg %p84
        %p307 = pneg %p81
        %p308 = pneg %p105
        %p309 = pneg %p102
        %p310 = pneg %p126
        %p311 = pneg %p123
        %p312 = pneg %p147
        %p313 = pneg %p144
        %p314 = pneg %p168
        %p315 = pneg %p165
        %p316 = pneg %p194
        %p317 = pneg %p191
        %s318 = sand.u32 %s181, 1
        %s319 = scalar_lea.sflag [#allocation4], %s318
        %s320 = sand.u32 %s181, 1
        %s321 = scalar_lea.vmem [#allocation3], %s320
        %v322 = vld [vmem:[%s294] sm:$0xff]
        %v323 = vld [vmem:[%s294 + $0x8] sm:$0xff]
        %v324 = vld [vmem:[%s294 + $0x10] sm:$0xff]
        %v325 = vld [vmem:[%s294 + $0x18] sm:$0xff]
        %v326 = vld [vmem:[%s1] sm:$0xff]
        %v327 = vld [vmem:[%s1 + $0x8] sm:$0xff]
        %v328 = vld [vmem:[%s1 + $0x10] sm:$0xff]
        %v329 = vld [vmem:[%s1 + $0x18] sm:$0xff]
        %v330 = vld [vmem:[%s1 + $0x20] sm:$0xff]
        %vm331 = vcmask 261120
        %v333 = vsel %vm331, %v326, 0
        %v336 = vsel %vm331, %v327, 0
        %v339 = vsel %vm331, %v328, 0
        %v342 = vsel %vm331, %v329, 0
        %v345 = vsel %vm331, %v330, 0
        %347 = vmatprep.subr.mxu0 0.0
        %348 = vmatpush1.msra.mxu0 %v322
        %349 = vmatprep.subr.mxu0 0.0
        %350 = vmatpush1.msra.mxu0 %v323
        %351 = vmatprep.subr.mxu0 0.0
        %352 = vmatpush1.msra.mxu0 %v324
        %353 = vmatprep.subr.mxu0 0.0
        %354 = vmatpush1.msra.mxu0 %v325
        %355 = vmatprep.subr.mxu0 0.0
        %356 = vmatpush1.msra.mxu0 0.0
        %357 = vmatprep.subr.mxu0 0.0
        %358 = vmatpush1.msra.mxu0 0.0
        %359 = vmatprep.subr.mxu0 0.0
        %360 = vmatpush1.msra.mxu0 0.0
        %361 = vmatprep.subr.mxu0 0.0
        %362 = vmatpush1.msra.mxu0 0.0
        %363 = vmatprep.subr.mxu0 0.0
        %364 = vmatpush1.msra.mxu0 0.0
        %365 = vmatprep.subr.mxu0 0.0
        %366 = vmatpush1.msra.mxu0 0.0
        %367 = vmatprep.subr.mxu0 0.0
        %368 = vmatpush1.msra.mxu0 0.0
        %369 = vmatprep.subr.mxu0 0.0
        %370 = vmatpush1.msra.mxu0 0.0
        %371 = vmatprep.subr.mxu0 0.0
        %372 = vmatpush1.msra.mxu0 0.0
        %373 = vmatprep.subr.mxu0 0.0
        %374 = vmatpush1.msra.mxu0 0.0
        %375 = vmatprep.subr.mxu0 0.0
        %376 = vmatpush1.msra.mxu0 0.0
        %377 = vmatprep.subr.mxu0 0.0
        %378 = vmatpush1.msra.mxu0 0.0
        %379 = vmatprep.subr.mxu0 0.0
        %380 = vmatpush1.msra.mxu0 0.0
        %381 = vmatprep.subr.mxu0 0.0
        %382 = vmatpush1.msra.mxu0 0.0
        %383 = vmatprep.subr.mxu0 0.0
        %384 = vmatpush1.msra.mxu0 0.0
        %385 = vmatprep.subr.mxu0 0.0
        %386 = vmatpush1.msra.mxu0 0.0
        %387 = vmatprep.subr.mxu0 0.0
        %388 = vmatpush1.msra.mxu0 0.0
        %389 = vmatprep.subr.mxu0 0.0
        %390 = vmatpush1.msra.mxu0 0.0
        %391 = vmatprep.subr.mxu0 0.0
        %392 = vmatpush1.msra.mxu0 0.0
        %393 = vmatprep.subr.mxu0 0.0
        %394 = vmatpush1.msra.mxu0 0.0
        %395 = vmatprep.subr.mxu0 0.0
        %396 = vmatpush1.msra.mxu0 0.0
        %397 = vmatprep.subr.mxu0 0.0
        %398 = vmatpush1.msra.mxu0 0.0
        %399 = vmatprep.subr.mxu0 0.0
        %400 = vmatpush1.msra.mxu0 0.0
        %401 = vmatprep.subr.mxu0 0.0
        %402 = vmatpush1.msra.mxu0 0.0
        %403 = vmatprep.subr.mxu0 0.0
        %404 = vmatpush1.msra.mxu0 0.0
        %405 = vmatprep.subr.mxu0 0.0
        %406 = vmatpush1.msra.mxu0 0.0
        %407 = vmatprep.subr.mxu0 0.0
        %408 = vmatpush1.msra.mxu0 0.0
        %409 = vmatprep.subr.mxu0 0.0
        %410 = vmatpush1.msra.mxu0 0.0
        %411 = vmatprep.mubr.f32.mxu0 0.0
        %412 = vmatmul.mubr.f32.gmra.mrb[0].mxu0 %v333
        %v413 = vpop.f32.mrb[0].mxu0
        %v414 = vadd.f32 0.0, %v413
        %v415 = vpop.f32.mrb[0].mxu0
        %416 = vmatprep.mubr.f32.mxu0 0.0
        %417 = vmatmul.mubr.f32.gmra.mrb[0].mxu0 %v336
        %v418 = vpop.f32.mrb[0].mxu0
        %v419 = vadd.f32 0.0, %v418
        %v420 = vpop.f32.mrb[0].mxu0
        %421 = vmatprep.mubr.f32.mxu0 0.0
        %422 = vmatmul.mubr.f32.gmra.mrb[0].mxu0 %v339
        %v423 = vpop.f32.mrb[0].mxu0
        %v424 = vadd.f32 0.0, %v423
        %v425 = vpop.f32.mrb[0].mxu0
        %426 = vmatprep.mubr.f32.mxu0 0.0
        %427 = vmatmul.mubr.f32.gmra.mrb[0].mxu0 %v342
        %v428 = vpop.f32.mrb[0].mxu0
        %v429 = vadd.f32 0.0, %v428
        %v430 = vpop.f32.mrb[0].mxu0
        %431 = vmatprep.mubr.f32.mxu0 0.0
        %432 = vmatmul.mubr.f32.gmra.mrb[0].mxu0 %v345
        %v433 = vpop.f32.mrb[0].mxu0
        %v434 = vadd.f32 0.0, %v433
        %v435 = vpop.f32.mrb[0].mxu0
        %436 = vdwg.mxu0
        %v437 = vld [vmem:[%s2] sm:$0xff]
        %v438 = vld [vmem:[%s2 + $0x8] sm:$0xff]
        %v439 = vld [vmem:[%s2 + $0x10] sm:$0xff]
        %v440 = vld [vmem:[%s2 + $0x18] sm:$0xff]
        %v441 = vld [vmem:[%s4] sm:$0xff]
        %v442 = vld [vmem:[%s4 + $0x8] sm:$0xff]
        %v443 = vld [vmem:[%s4 + $0x10] sm:$0xff]
        %v444 = vld [vmem:[%s4 + $0x18] sm:$0xff]
        %446 = vset.pattern.permute.xlu0 0
        %447 = vperm.xlu0 %446, %v441
        %v448 = vpop.permute.xlu0 %447
        %451 = vset.pattern.permute.xlu0 0
        %452 = vperm.xlu0 %451, %v442
        %v453 = vpop.permute.xlu0 %452
        %456 = vset.pattern.permute.xlu0 0
        %457 = vperm.xlu0 %456, %v443
        %v458 = vpop.permute.xlu0 %457
        %461 = vset.pattern.permute.xlu0 0
        %462 = vperm.xlu0 %461, %v444
        %v463 = vpop.permute.xlu0 %462
        %vm465 = vcmask 326656
        %v467 = vsel %vm465, %v437, 0
        %v470 = vsel %vm465, %v438, 0
        %v473 = vsel %vm465, %v439, 0
        %v476 = vsel %vm465, %v440, 0
        %478 = vmatprep.subr.mxu0 0.0
        %479 = vmatpush1.msra.mxu0 %v414
        %480 = vmatprep.subr.mxu0 0.0
        %481 = vmatpush1.msra.mxu0 %v419
        %482 = vmatprep.subr.mxu0 0.0
        %483 = vmatpush1.msra.mxu0 %v424
        %484 = vmatprep.subr.mxu0 0.0
        %485 = vmatpush1.msra.mxu0 %v429
        %486 = vmatprep.subr.mxu0 0.0
        %487 = vmatpush1.msra.mxu0 %v434
        %488 = vmatprep.subr.mxu0 0.0
        %489 = vmatpush1.msra.mxu0 0.0
        %490 = vmatprep.subr.mxu0 0.0
        %491 = vmatpush1.msra.mxu0 0.0
        %492 = vmatprep.subr.mxu0 0.0
        %493 = vmatpush1.msra.mxu0 0.0
        %494 = vmatprep.subr.mxu0 0.0
        %495 = vmatpush1.msra.mxu0 0.0
        %496 = vmatprep.subr.mxu0 0.0
        %497 = vmatpush1.msra.mxu0 0.0
        %498 = vmatprep.subr.mxu0 0.0
        %499 = vmatpush1.msra.mxu0 0.0
        %500 = vmatprep.subr.mxu0 0.0
        %501 = vmatpush1.msra.mxu0 0.0
        %502 = vmatprep.subr.mxu0 0.0
        %503 = vmatpush1.msra.mxu0 0.0
        %504 = vmatprep.subr.mxu0 0.0
        %505 = vmatpush1.msra.mxu0 0.0
        %506 = vmatprep.subr.mxu0 0.0
        %507 = vmatpush1.msra.mxu0 0.0
        %508 = vmatprep.subr.mxu0 0.0
        %509 = vmatpush1.msra.mxu0 0.0
        %510 = vmatprep.subr.mxu0 0.0
        %511 = vmatpush1.msra.mxu0 0.0
        %512 = vmatprep.subr.mxu0 0.0
        %513 = vmatpush1.msra.mxu0 0.0
        %514 = vmatprep.subr.mxu0 0.0
        %515 = vmatpush1.msra.mxu0 0.0
        %516 = vmatprep.subr.mxu0 0.0
        %517 = vmatpush1.msra.mxu0 0.0
        %518 = vmatprep.subr.mxu0 0.0
        %519 = vmatpush1.msra.mxu0 0.0
        %520 = vmatprep.subr.mxu0 0.0
        %521 = vmatpush1.msra.mxu0 0.0
        %522 = vmatprep.subr.mxu0 0.0
        %523 = vmatpush1.msra.mxu0 0.0
        %524 = vmatprep.subr.mxu0 0.0
        %525 = vmatpush1.msra.mxu0 0.0
        %526 = vmatprep.subr.mxu0 0.0
        %527 = vmatpush1.msra.mxu0 0.0
        %528 = vmatprep.subr.mxu0 0.0
        %529 = vmatpush1.msra.mxu0 0.0
        %530 = vmatprep.subr.mxu0 0.0
        %531 = vmatpush1.msra.mxu0 0.0
        %532 = vmatprep.subr.mxu0 0.0
        %533 = vmatpush1.msra.mxu0 0.0
        %534 = vmatprep.subr.mxu0 0.0
        %535 = vmatpush1.msra.mxu0 0.0
        %536 = vmatprep.subr.mxu0 0.0
        %537 = vmatpush1.msra.mxu0 0.0
        %538 = vmatprep.subr.mxu0 0.0
        %539 = vmatpush1.msra.mxu0 0.0
        %540 = vmatprep.subr.mxu0 0.0
        %541 = vmatpush1.msra.mxu0 0.0
        %542 = vmatprep.mubr.f32.mxu0 0.0
        %543 = vmatmul.mubr.f32.gmra.mrb[0].mxu0 %v467
        %v544 = vpop.f32.mrb[0].mxu0
        %v545 = vadd.f32 %v448, %v544
        %v546 = vpop.f32.mrb[0].mxu0
        %547 = vmatprep.mubr.f32.mxu0 0.0
        %548 = vmatmul.mubr.f32.gmra.mrb[0].mxu0 %v470
        %v549 = vpop.f32.mrb[0].mxu0
        %v550 = vadd.f32 %v453, %v549
        %v551 = vpop.f32.mrb[0].mxu0
        %552 = vmatprep.mubr.f32.mxu0 0.0
        %553 = vmatmul.mubr.f32.gmra.mrb[0].mxu0 %v473
        %v554 = vpop.f32.mrb[0].mxu0
        %v555 = vadd.f32 %v458, %v554
        %v556 = vpop.f32.mrb[0].mxu0
        %557 = vmatprep.mubr.f32.mxu0 0.0
        %558 = vmatmul.mubr.f32.gmra.mrb[0].mxu0 %v476
        %v559 = vpop.f32.mrb[0].mxu0
        %v560 = vadd.f32 %v463, %v559
        %v561 = vpop.f32.mrb[0].mxu0
        %562 = vdwg.mxu0
        %v563 = vxor.u32 %v545, 2147483648
        %v564 = vxor.u32 %v550, 2147483648
        %v565 = vxor.u32 %v555, 2147483648
        %v566 = vxor.u32 %v560, 2147483648
        %v567 = vmul.f32 %v563, 1.442695
        %v568 = vpow.pop %v567
        %v569 = vmul.f32 %v564, 1.442695
        %v570 = vpow.pop %v569
        %v571 = vmul.f32 %v565, 1.442695
        %v572 = vpow.pop %v571
        %v573 = vmul.f32 %v566, 1.442695
        %v574 = vpow.pop %v573
        %v575 = vadd.f32 %v568, 1.0
        %v576 = vadd.f32 %v570, 1.0
        %v577 = vadd.f32 %v572, 1.0
        %v578 = vadd.f32 %v574, 1.0
        %v579 = vrcp.pop %v575
        %v580 = vmul.f32 1.0, %v579
        %v581 = vrcp.pop %v576
        %v582 = vmul.f32 1.0, %v581
        %v583 = vrcp.pop %v577
        %v584 = vmul.f32 1.0, %v583
        %v585 = vrcp.pop %v578
        %v586 = vmul.f32 1.0, %v585
        %v587 = vld [vmem:[%s3] sm:$0xff]
        %v588 = vld [vmem:[%s3 + $0x8] sm:$0xff]
        %v589 = vld [vmem:[%s3 + $0x10] sm:$0xff]
        %v590 = vld [vmem:[%s3 + $0x18] sm:$0xff]
        %v591 = vld [vmem:[%s3 + $0x20] sm:$0xff]
        %v592 = vld [vmem:[%s5] sm:$0xff]
        %v593 = vld [vmem:[%s5 + $0x8] sm:$0xff]
        %v594 = vld [vmem:[%s5 + $0x10] sm:$0xff]
        %v595 = vld [vmem:[%s5 + $0x18] sm:$0xff]
        %v596 = vld [vmem:[%s5 + $0x20] sm:$0xff]
        %598 = vset.pattern.permute.xlu0 0
        %599 = vperm.xlu0 %598, %v592
        %v600 = vpop.permute.xlu0 %599
        %603 = vset.pattern.permute.xlu0 0
        %604 = vperm.xlu0 %603, %v593
        %v605 = vpop.permute.xlu0 %604
        %608 = vset.pattern.permute.xlu0 0
        %609 = vperm.xlu0 %608, %v594
        %v610 = vpop.permute.xlu0 %609
        %613 = vset.pattern.permute.xlu0 0
        %614 = vperm.xlu0 %613, %v595
        %v615 = vpop.permute.xlu0 %614
        %618 = vset.pattern.permute.xlu0 0
        %619 = vperm.xlu0 %618, %v596
        %v620 = vpop.permute.xlu0 %619
        %v623 = vsel %vm331, %v587, 0
        %v626 = vsel %vm331, %v588, 0
        %v629 = vsel %vm331, %v589, 0
        %v632 = vsel %vm331, %v590, 0
        %v635 = vsel %vm331, %v591, 0
        %637 = vmatprep.subr.mxu0 0.0
        %638 = vmatpush1.msra.mxu0 %v580
        %639 = vmatprep.subr.mxu0 0.0
        %640 = vmatpush1.msra.mxu0 %v582
        %641 = vmatprep.subr.mxu0 0.0
        %642 = vmatpush1.msra.mxu0 %v584
        %643 = vmatprep.subr.mxu0 0.0
        %644 = vmatpush1.msra.mxu0 %v586
        %645 = vmatprep.subr.mxu0 0.0
        %646 = vmatpush1.msra.mxu0 0.0
        %647 = vmatprep.subr.mxu0 0.0
        %648 = vmatpush1.msra.mxu0 0.0
        %649 = vmatprep.subr.mxu0 0.0
        %650 = vmatpush1.msra.mxu0 0.0
        %651 = vmatprep.subr.mxu0 0.0
        %652 = vmatpush1.msra.mxu0 0.0
        %653 = vmatprep.subr.mxu0 0.0
        %654 = vmatpush1.msra.mxu0 0.0
        %655 = vmatprep.subr.mxu0 0.0
        %656 = vmatpush1.msra.mxu0 0.0
        %657 = vmatprep.subr.mxu0 0.0
        %658 = vmatpush1.msra.mxu0 0.0
        %659 = vmatprep.subr.mxu0 0.0
        %660 = vmatpush1.msra.mxu0 0.0
        %661 = vmatprep.subr.mxu0 0.0
        %662 = vmatpush1.msra.mxu0 0.0
        %663 = vmatprep.subr.mxu0 0.0
        %664 = vmatpush1.msra.mxu0 0.0
        %665 = vmatprep.subr.mxu0 0.0
        %666 = vmatpush1.msra.mxu0 0.0
        %667 = vmatprep.subr.mxu0 0.0
        %668 = vmatpush1.msra.mxu0 0.0
        %669 = vmatprep.subr.mxu0 0.0
        %670 = vmatpush1.msra.mxu0 0.0
        %671 = vmatprep.subr.mxu0 0.0
        %672 = vmatpush1.msra.mxu0 0.0
        %673 = vmatprep.subr.mxu0 0.0
        %674 = vmatpush1.msra.mxu0 0.0
        %675 = vmatprep.subr.mxu0 0.0
        %676 = vmatpush1.msra.mxu0 0.0
        %677 = vmatprep.subr.mxu0 0.0
        %678 = vmatpush1.msra.mxu0 0.0
        %679 = vmatprep.subr.mxu0 0.0
        %680 = vmatpush1.msra.mxu0 0.0
        %681 = vmatprep.subr.mxu0 0.0
        %682 = vmatpush1.msra.mxu0 0.0
        %683 = vmatprep.subr.mxu0 0.0
        %684 = vmatpush1.msra.mxu0 0.0
        %685 = vmatprep.subr.mxu0 0.0
        %686 = vmatpush1.msra.mxu0 0.0
        %687 = vmatprep.subr.mxu0 0.0
        %688 = vmatpush1.msra.mxu0 0.0
        %689 = vmatprep.subr.mxu0 0.0
        %690 = vmatpush1.msra.mxu0 0.0
        %691 = vmatprep.subr.mxu0 0.0
        %692 = vmatpush1.msra.mxu0 0.0
        %693 = vmatprep.subr.mxu0 0.0
        %694 = vmatpush1.msra.mxu0 0.0
        %695 = vmatprep.subr.mxu0 0.0
        %696 = vmatpush1.msra.mxu0 0.0
        %697 = vmatprep.subr.mxu0 0.0
        %698 = vmatpush1.msra.mxu0 0.0
        %699 = vmatprep.subr.mxu0 0.0
        %700 = vmatpush1.msra.mxu0 0.0
        %701 = vmatprep.mubr.f32.mxu0 0.0
        %702 = vmatmul.mubr.f32.gmra.mrb[0].mxu0 %v623
        %v703 = vpop.f32.mrb[0].mxu0
        %v704 = vadd.f32 %v600, %v703
        %v705 = vpop.f32.mrb[0].mxu0
        %706 = vmatprep.mubr.f32.mxu0 0.0
        %707 = vmatmul.mubr.f32.gmra.mrb[0].mxu0 %v626
        %v708 = vpop.f32.mrb[0].mxu0
        %v709 = vadd.f32 %v605, %v708
        %v710 = vpop.f32.mrb[0].mxu0
        %711 = vmatprep.mubr.f32.mxu0 0.0
        %712 = vmatmul.mubr.f32.gmra.mrb[0].mxu0 %v629
        %v713 = vpop.f32.mrb[0].mxu0
        %v714 = vadd.f32 %v610, %v713
        %v715 = vpop.f32.mrb[0].mxu0
        %716 = vmatprep.mubr.f32.mxu0 0.0
        %717 = vmatmul.mubr.f32.gmra.mrb[0].mxu0 %v632
        %v718 = vpop.f32.mrb[0].mxu0
        %v719 = vadd.f32 %v615, %v718
        %v720 = vpop.f32.mrb[0].mxu0
        %721 = vmatprep.mubr.f32.mxu0 0.0
        %722 = vmatmul.mubr.f32.gmra.mrb[0].mxu0 %v635
        %v723 = vpop.f32.mrb[0].mxu0
        %v724 = vadd.f32 %v620, %v723
        %v725 = vpop.f32.mrb[0].mxu0
        %726 = vdwg.mxu0
        %v727 = vxor.u32 %v704, 2147483648
        %v728 = vxor.u32 %v709, 2147483648
        %v729 = vxor.u32 %v714, 2147483648
        %v730 = vxor.u32 %v719, 2147483648
        %v731 = vxor.u32 %v724, 2147483648
        %v732 = vmul.f32 %v727, 1.442695
        %v733 = vpow.pop %v732
        %v734 = vmul.f32 %v728, 1.442695
        %v735 = vpow.pop %v734
        %v736 = vmul.f32 %v729, 1.442695
        %v737 = vpow.pop %v736
        %v738 = vmul.f32 %v730, 1.442695
        %v739 = vpow.pop %v738
        %v740 = vmul.f32 %v731, 1.442695
        %v741 = vpow.pop %v740
        %v742 = vadd.f32 %v733, 1.0
        %v743 = vadd.f32 %v735, 1.0
        %v744 = vadd.f32 %v737, 1.0
        %v745 = vadd.f32 %v739, 1.0
        %v746 = vadd.f32 %v741, 1.0
        %v747 = vrcp.pop %v742
        %v748 = vmul.f32 1.0, %v747
        %v749 = vrcp.pop %v743
        %v750 = vmul.f32 1.0, %v749
        %v751 = vrcp.pop %v744
        %v752 = vmul.f32 1.0, %v751
        %v753 = vrcp.pop %v745
        %v754 = vmul.f32 1.0, %v753
        %v755 = vrcp.pop %v746
        %v756 = vmul.f32 1.0, %v755
        %v757 = vsub.f32 %v414, %v748
        %v758 = vsub.f32 %v419, %v750
        %v759 = vsub.f32 %v424, %v752
        %v760 = vsub.f32 %v429, %v754
        %v761 = vsub.f32 %v434, %v756
        %v762 = vld [vmem:[%s6] sm:$0xf]
        %v763 = vmul.f32 %v757, %v757
        %v764 = vmul.f32 %v758, %v758
        %v765 = vmul.f32 %v759, %v759
        %v766 = vmul.f32 %v760, %v760
        %v767 = vmul.f32 %v761, %v761
        %v769 = vsel %vm465, %v762, 0
        %771 = vmatprep.subr.mxu0 0.0
        %772 = vmatpush1.msra.mxu0 %v763
        %773 = vmatprep.subr.mxu0 0.0
        %774 = vmatpush1.msra.mxu0 %v764
        %775 = vmatprep.subr.mxu0 0.0
        %776 = vmatpush1.msra.mxu0 %v765
        %777 = vmatprep.subr.mxu0 0.0
        %778 = vmatpush1.msra.mxu0 %v766
        %779 = vmatprep.subr.mxu0 0.0
        %780 = vmatpush1.msra.mxu0 %v767
        %781 = vmatprep.subr.mxu0 0.0
        %782 = vmatpush1.msra.mxu0 0.0
        %783 = vmatprep.subr.mxu0 0.0
        %784 = vmatpush1.msra.mxu0 0.0
        %785 = vmatprep.subr.mxu0 0.0
        %786 = vmatpush1.msra.mxu0 0.0
        %787 = vmatprep.subr.mxu0 0.0
        %788 = vmatpush1.msra.mxu0 0.0
        %789 = vmatprep.subr.mxu0 0.0
        %790 = vmatpush1.msra.mxu0 0.0
        %791 = vmatprep.subr.mxu0 0.0
        %792 = vmatpush1.msra.mxu0 0.0
        %793 = vmatprep.subr.mxu0 0.0
        %794 = vmatpush1.msra.mxu0 0.0
        %795 = vmatprep.subr.mxu0 0.0
        %796 = vmatpush1.msra.mxu0 0.0
        %797 = vmatprep.subr.mxu0 0.0
        %798 = vmatpush1.msra.mxu0 0.0
        %799 = vmatprep.subr.mxu0 0.0
        %800 = vmatpush1.msra.mxu0 0.0
        %801 = vmatprep.subr.mxu0 0.0
        %802 = vmatpush1.msra.mxu0 0.0
        %803 = vmatprep.subr.mxu0 0.0
        %804 = vmatpush1.msra.mxu0 0.0
        %805 = vmatprep.subr.mxu0 0.0
        %806 = vmatpush1.msra.mxu0 0.0
        %807 = vmatprep.subr.mxu0 0.0
        %808 = vmatpush1.msra.mxu0 0.0
        %809 = vmatprep.subr.mxu0 0.0
        %810 = vmatpush1.msra.mxu0 0.0
        %811 = vmatprep.subr.mxu0 0.0
        %812 = vmatpush1.msra.mxu0 0.0
        %813 = vmatprep.subr.mxu0 0.0
        %814 = vmatpush1.msra.mxu0 0.0
        %815 = vmatprep.subr.mxu0 0.0
        %816 = vmatpush1.msra.mxu0 0.0
        %817 = vmatprep.subr.mxu0 0.0
        %818 = vmatpush1.msra.mxu0 0.0
        %819 = vmatprep.subr.mxu0 0.0
        %820 = vmatpush1.msra.mxu0 0.0
        %821 = vmatprep.subr.mxu0 0.0
        %822 = vmatpush1.msra.mxu0 0.0
        %823 = vmatprep.subr.mxu0 0.0
        %824 = vmatpush1.msra.mxu0 0.0
        %825 = vmatprep.subr.mxu0 0.0
        %826 = vmatpush1.msra.mxu0 0.0
        %827 = vmatprep.subr.mxu0 0.0
        %828 = vmatpush1.msra.mxu0 0.0
        %829 = vmatprep.subr.mxu0 0.0
        %830 = vmatpush1.msra.mxu0 0.0
        %831 = vmatprep.subr.mxu0 0.0
        %832 = vmatpush1.msra.mxu0 0.0
        %833 = vmatprep.subr.mxu0 0.0
        %834 = vmatpush1.msra.mxu0 0.0
        %835 = vmatprep.mubr.f32.mxu0 0.0
        %836 = vmatmul.mubr.f32.gmra.mrb[0].mxu0 %v769
        %v837 = vpop.f32.mrb[0].mxu0
        %v838 = vadd.f32 1e-06, %v837
        %v839 = vpop.f32.mrb[0].mxu0
        %840 = vdwg.mxu0
        %v841 = vrsqrt.pop %v838
        %v842 = vmul.f32 %v838, %v841
        %vm843 = vcmp.eq.f32.partialorder %v838, inf
        %v844 = vsel %vm843, %v838, %v842
        %vm845 = vcmp.eq.f32.partialorder %v838, 0.0
        %v846 = vand.u32 %v838, 2147483648
        %v847 = vsel %vm845, %v846, %v844
        %vm848 = vcmask 1043456
        %v849 = vsel %vm848, %v847, 0.0
        %v850 = vrot.slane %v849, 4
        %v851 = vadd.f32 %v849, %v850
        %v852 = vrot.slane %v851, 2
        %v853 = vadd.f32 %v851, %v852
        %v854 = vrot.slane %v853, 1
        %v855 = vadd.f32 %v853, %v854
        %856 = vst [vmem:[%s321] sm:$0x1] %v855
        %s857 = sand.u32 %s181, 1
        %s858 = scalar_lea.sflag [#allocation4], %s857
        %s859 = sand.u32 %s181, 1
        %s860 = scalar_lea.vmem [#allocation3], %s859
        // Predicated region
        $region87: #{kitnet_forward.1} parent=81 // pred_check
          %p861 = pneg %p191
        $region88: #{kitnet_forward.1} parent=81 // pred_check_branch
          %863 = sbr.rel (%p861) target = $region90
        $region89: #{kitnet_forward.1} parent=81 // pred_region
          %s865 = ssub.s32 16, 16
          %866 = vsyncadd %s858, %s865
          %s867 = smul.addr %s21, 16
          %s868 = scalar_lea.hbm %s7, %s867
          %s870 = sshll.u32 %s860, 4
          %s871 = int_to_ptr.vmem [resolvable:$true] %s870
          %873 = dma.vmem_to_hbm [thread:$0]  %s871, 16, %s868, %s858
        $region90: #{kitnet_forward.1} parent=81 // pred_fallthru
          _
      $region82: #{kitnet_forward.1} parent=5 // pred_fallthru
        _
      %p874 = scmp.le.s32.totalorder 2, %s16
      // Predicated region
      $region91: #{kitnet_forward.1} parent=5 // pred_check
        %p875 = pneg %p874
      $region92: #{kitnet_forward.1} parent=5 // pred_check_branch
        %877 = sbr.rel (%p875) target = $region94
      $region93: #{kitnet_forward.1} parent=5 // pred_region
        %s878 = ssub.s32 %s16, 2
        // Predicated region
        $region95: #{kitnet_forward.1} parent=93 // pred_check
          %p879 = pneg %p197
        $region96: #{kitnet_forward.1} parent=93 // pred_check_branch
          %881 = sbr.rel (%p879) target = $region98
        $region97: #{kitnet_forward.1} parent=93 // pred_region
          %s882 = sand.u32 %s182, 1
          %s883 = scalar_lea.sflag [#allocation4], %s882
          %s884 = sand.u32 %s182, 1
          %s885 = scalar_lea.vmem [#allocation3], %s884
          %886 = dma.done %s883, 16
        $region98: #{kitnet_forward.1} parent=93 // pred_fallthru
          _
      $region94: #{kitnet_forward.1} parent=5 // pred_fallthru
        _
    $region6: #{kitnet_forward.1} parent=1 // loop_footer
      %s20 = sadd.s32 1, %s16
    $region7: #{kitnet_forward.1} parent=1 // loop_footer_branch
      %15 = sbr.rel target = $region3
    $region8: #{kitnet_forward.1} parent=1 // loop_exit
      _
    %887 = vsyncpa [#allocation4], 1
    %s888 = scalar_lea.sflag [#allocation4], 1
    %889 = vsyncpa %s888, 1

</llo_original>
